<compile_context>
chip_gen: v7x
topology: tpu7x:2x2x1
jax: 0.10.0
libtpu: 0.0.40
codegen_flags: <defaults>
</compile_context>

<pallas_src>
import functools

import jax
import jax.numpy as jnp
import numpy as np
from jax.experimental import pallas as pl
from jax.experimental.pallas import tpu as pltpu


# ----------------------------- Pallas kernel ------------------------------- #

def _fused_embedding_kernel(x_ref, w_ref, b_ref, o_ref):
    # x_ref : (L, tile_bm)   compute dtype (bf16/f32)
    # w_ref : (O, L)         compute dtype (bf16/f32)   -- fused W_L^T
    # b_ref : (O, 1)         f32                        -- fused bias
    # o_ref : (O, tile_bm)   f32
    acc = jnp.dot(w_ref[...], x_ref[...], preferred_element_type=jnp.float32)
    o_ref[...] = (acc + b_ref[...]).astype(o_ref.dtype)


def _round_up(x, m):
    return ((x + m - 1) // m) * m


def _choose_tile_bm(bm):
    # Lane-dim tile over B*M: multiple of 128, capped so large problems get
    # >=2 grid steps (v7x megacore sharding, pipeline overlap) and the
    # double-buffered blocks stay far inside the 32 MiB scoped-VMEM default.
    if bm > 1024:
        return 512
    if bm > 256:
        return 256
    return 128


# ------------------------------ Host wrapper -------------------------------- #

class EmbeddingNetPallas:
    """JAX/Pallas re-implementation of Embedding_Net."""

    def __init__(self, patch_size, input_len, out_len, emb_dim, key,
                 compute_dtype=jnp.bfloat16):
        self.patch_size = patch_size if patch_size <= input_len else input_len
        self.stride = self.patch_size // 2
        self.out_len = out_len
        self.emb_dim = emb_dim
        self.input_len = input_len
        # integer division (avoid float-division off-by-one)
        self.num_patches = (input_len - self.patch_size) // self.stride + 1
        self.compute_dtype = compute_dtype

        k1, k2, k3, k4 = jax.random.split(key, 4)
        p, e, n, o, L = (self.patch_size, emb_dim, self.num_patches,
                         out_len, input_len)
        # Deterministic synthetic params (shapes match the nn.Linear weights).
        self.w1 = jax.random.normal(k1, (p, e), jnp.float32) * 0.05   # (in, out)
        self.b1 = jax.random.normal(k2, (1, e), jnp.float32) * 0.05
        # net2 weight: Linear(n*e -> o); flatten order of its input is (n, e).
        self.w2 = (jax.random.normal(k3, (n * e, o), jnp.float32) * 0.05
                   ).reshape(n, e, o)
        self.b2 = jax.random.normal(k4, (1, o), jnp.float32) * 0.05

        # ---- exact algebraic fusion of net1, net2 and the patch unfold ---- #
        hi = jax.lax.Precision.HIGHEST
        # W_eff[n] = W1 @ W2[n]  -> (N, P, O)
        w_eff = jnp.einsum("pe,neo->npo", self.w1, self.w2, precision=hi)
        # time index hit by patch-position (n, p): l = n*stride + p
        idx = (self.stride * np.arange(n)[:, None]
               + np.arange(p)[None, :]).reshape(-1)                   # (N*P,)
        w_l = jnp.zeros((L, o), jnp.float32).at[jnp.asarray(idx)].add(
            w_eff.reshape(n * p, o))                                  # (L, O)
        b_eff = self.b2 + jnp.dot(self.b1, self.w2.sum(axis=0),
                                  precision=hi)                       # (1, O)
        self.w_l_t = jnp.asarray(w_l.T, compute_dtype)                # (O, L)
        self.b_eff_col = jnp.asarray(b_eff.T, jnp.float32)            # (O, 1)

    @functools.partial(jax.jit, static_argnums=0)
    def __call__(self, x):
        B, L, M = x.shape
        O = self.out_len
        BM = B * M
        tile_bm = _choose_tile_bm(BM)
        BM_pad = _round_up(BM, tile_bm)

        # Layout plumbing: put B*M on the lane (last) axis -> lane-dense GEMM.
        x_t = jnp.transpose(x, (1, 0, 2)).reshape(L, BM)              # (L, BM)
        if BM_pad != BM:
            x_t = jnp.pad(x_t, ((0, 0), (0, BM_pad - BM)))
        x_t = x_t.astype(self.compute_dtype)

        grid = (BM_pad // tile_bm,)
        out_t = pl.pallas_call(
            _fused_embedding_kernel,
            out_shape=jax.ShapeDtypeStruct((O, BM_pad), jnp.float32),
            grid_spec=pltpu.PrefetchScalarGridSpec(
                num_scalar_prefetch=0,
                grid=grid,
                in_specs=[
                    pl.BlockSpec((L, tile_bm), lambda i: (0, i)),     # x^T tile
                    pl.BlockSpec((O, L), lambda i: (0, 0)),           # W_L^T (resident)
                    pl.BlockSpec((O, 1), lambda i: (0, 0)),           # b_eff (resident)
                ],
                out_specs=pl.BlockSpec((O, tile_bm), lambda i: (0, i)),
            ),
            compiler_params=pltpu.CompilerParams(
                dimension_semantics=("parallel",)),
        )(x_t, self.w_l_t, self.b_eff_col)

        out = out_t[:, :BM]                                           # (O, BM)
        # rearrange '(b m) l -> b l m' (computed transposed here)
        return jnp.transpose(out.reshape(O, B, M), (1, 0, 2))         # (B, O, M)

    # Pure-JAX reference mirroring the PyTorch forward (unfold + 2 linears).
    def reference(self, x):
        B, L, M = x.shape
        hi = jax.lax.Precision.HIGHEST
        x_bml = jnp.transpose(x, (0, 2, 1))                           # (B, M, L)
        if self.num_patches != 1:
            idx = (self.stride * np.arange(self.num_patches)[:, None]
                   + np.arange(self.patch_size)[None, :])             # (N, P)
            xp = x_bml[:, :, idx]                                     # (B, M, N, P)
        else:
            xp = x_bml[:, :, None, :]
        xp = xp.reshape(B * M, self.num_patches, -1).astype(jnp.float32)
        h = jnp.einsum("bnp,pe->bne", xp, self.w1, precision=hi) + self.b1[0]
        flat = h.reshape(B * M, -1)                                   # (BM, N*E)
        out = jnp.dot(flat, self.w2.reshape(-1, self.out_len),
                      precision=hi) + self.b2[0]
        return jnp.transpose(out.reshape(B, M, self.out_len), (0, 2, 1))


# ---------------------------------- main ------------------------------------ #

if __name__ == "__main__":
    key = jax.random.PRNGKey(0)
    kx, kp = jax.random.split(key)

    # Small shapes consistent with the module: x is (B, L=input_len, M=enc_in).
    B, L, M = 2, 16, 4
    patch_size, out_len, emb_dim = 8, 8, 32

    x = jax.random.normal(kx, (B, L, M), jnp.float32)

    model = EmbeddingNetPallas(patch_size=patch_size, input_len=L,
                               out_len=out_len, emb_dim=emb_dim, key=kp)

    y = jax.block_until_ready(model(x))
    y_ref = model.reference(x)

    assert y.shape == (B, out_len, M)
    # bf16 operands with f32 accumulation vs. f32 (HIGHEST) reference.
    np.testing.assert_allclose(np.asarray(y), np.asarray(y_ref),
                               rtol=2e-2, atol=5e-3)

    print("KERNEL_OK")
</pallas_src>

<mosaic_0001>
module attributes {stable_mosaic.version = 11 : i64} {
  func.func @_fused_embedding_kernel(%arg0: i32, %arg1: memref<16x128xbf16, #tpu.memory_space<vmem>>, %arg2: memref<8x16xbf16, #tpu.memory_space<vmem>>, %arg3: memref<8x1xf32, #tpu.memory_space<vmem>>, %arg4: memref<8x128xf32, #tpu.memory_space<vmem>>) attributes {dimension_semantics = [#tpu.dimension_semantics<parallel>], iteration_bounds = array<i64: 1>, scalar_prefetch = 0 : i64, scratch_operands = 0 : i64, tpu.core_type = #tpu.core_type<tc>, window_params = [{transform_indices = @transform_0, window_bounds = array<i64: 16, 128>}, {pipeline_mode = #tpu.pipeline_mode<synchronous>, transform_indices = @transform_1, window_bounds = array<i64: 8, 16>}, {pipeline_mode = #tpu.pipeline_mode<synchronous>, transform_indices = @transform_2, window_bounds = array<i64: 8, 1>}, {transform_indices = @transform_3, window_bounds = array<i64: 8, 128>}]} {
    %c0 = arith.constant 0 : index
    %c0_0 = arith.constant 0 : index
    %0 = vector.load %arg2[%c0, %c0_0] : memref<8x16xbf16, #tpu.memory_space<vmem>>, vector<8x16xbf16>
    %c0_1 = arith.constant 0 : index
    %c0_2 = arith.constant 0 : index
    %1 = vector.load %arg1[%c0_1, %c0_2] : memref<16x128xbf16, #tpu.memory_space<vmem>>, vector<16x128xbf16>
    %cst = arith.constant dense<0.000000e+00> : vector<8x128xf32>
    %2 = tpu.matmul %0, %1, %cst {dimension_numbers = #tpu.dot_dimension_numbers<[1], [0], [0], [1], [0, 0, 1, 1], [], []>} : vector<8x16xbf16>, vector<16x128xbf16>, vector<8x128xf32> -> vector<8x128xf32>
    %c0_3 = arith.constant 0 : index
    %c0_4 = arith.constant 0 : index
    %3 = vector.load %arg3[%c0_3, %c0_4] : memref<8x1xf32, #tpu.memory_space<vmem>>, vector<8x1xf32>
    %4 = vector.broadcast %3 : vector<8x1xf32> to vector<8x128xf32>
    %5 = arith.addf %2, %4 : vector<8x128xf32>
    %c0_5 = arith.constant 0 : index
    %c0_6 = arith.constant 0 : index
    %6 = vector.load %arg4[%c0_5, %c0_6] : memref<8x128xf32, #tpu.memory_space<vmem>>, vector<8x128xf32>
    tpu.vector_store %arg4[%c0_5, %c0_6], %5 {strides = array<i32>} : memref<8x128xf32, #tpu.memory_space<vmem>>, vector<8x128xf32>,
    return
  }
  func.func @transform_0(%arg0: i32) -> (i32, i32) {
    %c0_i32 = arith.constant 0 : i32
    %c0_i32_0 = arith.constant 0 : i32
    return %c0_i32, %arg0 : i32, i32
  }
  func.func @transform_1(%arg0: i32) -> (i32, i32) {
    %c0_i32 = arith.constant 0 : i32
    %c0_i32_0 = arith.constant 0 : i32
    %c0_i32_1 = arith.constant 0 : i32
    return %c0_i32, %c0_i32_0 : i32, i32
  }
  func.func @transform_2(%arg0: i32) -> (i32, i32) {
    %c0_i32 = arith.constant 0 : i32
    %c0_i32_0 = arith.constant 0 : i32
    %c0_i32_1 = arith.constant 0 : i32
    return %c0_i32, %c0_i32_0 : i32, i32
  }
  func.func @transform_3(%arg0: i32) -> (i32, i32) {
    %c0_i32 = arith.constant 0 : i32
    %c0_i32_0 = arith.constant 0 : i32
    return %c0_i32, %arg0 : i32, i32
  }
}

</mosaic_0001>

<llo_original>
// kernel: a_call__.1
$region0: #{a_call__.1}
  #allocation0 [shape = 'u32[]', space=smem, size = 0x4, offset = 0x4, fixed_abs, tag = 'smem constant byte address 0x4 - core index']
  #allocation1 [shape = 'u32[144,128]{1,0:T(1,128)}', space=vmem, size = 0x12000, scoped, tag = 'internal scratch']
  %s0 = inlined_call_operand.vmem [shape: bf16[16,128], index: 0, kind: input, shape index: {}]
  %s1 = inlined_call_operand.vmem [shape: bf16[8,16], index: 1, kind: input, shape index: {}]
  %s2 = inlined_call_operand.vmem [shape: f32[8,1], index: 2, kind: input, shape index: {}]
  %s3 = inlined_call_operand.vmem [shape: f32[8,128], index: 3, kind: output, shape index: {}]
  %s4 = sld [smem:[#allocation0]]
  $region22: #{a_call__.1} parent=0
    _
  %s6 = ssub.s32 1, %s4
  %s7 = scalar_select 0, %s6, %s4
  // Predicated region
  $region2: #{a_call__.1} parent=0 // pred_check
    _
  $region3: #{a_call__.1} parent=0 // pred_check_branch
    %9 = sbr.rel (0) target = $region5
  $region4: #{a_call__.1} parent=0 // pred_region
    _
  $region5: #{a_call__.1} parent=0 // pred_fallthru
    _
  // Predicated region
  $region6: #{a_call__.1} parent=0 // pred_check
    _
  $region7: #{a_call__.1} parent=0 // pred_check_branch
    %11 = sbr.rel (0) target = $region9
  $region8: #{a_call__.1} parent=0 // pred_region
    _
  $region9: #{a_call__.1} parent=0 // pred_fallthru
    _
  // Predicated region
  $region10: #{a_call__.1} parent=0 // pred_check
    _
  $region11: #{a_call__.1} parent=0 // pred_check_branch
    %13 = sbr.rel (0) target = $region13
  $region12: #{a_call__.1} parent=0 // pred_region
    _
  $region13: #{a_call__.1} parent=0 // pred_fallthru
    _
  %v15 = vld [vmem:[%s1] sm:$0xf]
  %v16 = vld [vmem:[%s0] sm:$0xf]
  %v17 = vld [vmem:[%s0 + $0x4] sm:$0xf]
  %v18 = vld [vmem:[%s2] sm:$0xff]
  %20 = vset.pattern.permute.xlu0 0
  %21 = vperm.xlu0 %20, %v18
  %v22 = vpop.permute.xlu0 %21
  %v26 = vunpack.c.l.b16 %v16
  %v27 = vunpack.c.l.b16 %v17
  %v28 = vpack.c.b16 %v27, %v26
  %vm30 = vcmask 130048
  %v32 = vsel %vm30, %v15, 0
  %34 = vmatprep.subr.bf16.mxu0 0
  %35 = vmatpush1.bf16.msra.mxu0 %v28
  %36 = vmatprep.subr.bf16.mxu0 0
  %37 = vmatpush1.bf16.msra.mxu0 0
  %38 = vmatprep.subr.bf16.mxu0 0
  %39 = vmatpush1.bf16.msra.mxu0 0
  %40 = vmatprep.subr.bf16.mxu0 0
  %41 = vmatpush1.bf16.msra.mxu0 0
  %42 = vmatprep.subr.bf16.mxu0 0
  %43 = vmatpush1.bf16.msra.mxu0 0
  %44 = vmatprep.subr.bf16.mxu0 0
  %45 = vmatpush1.bf16.msra.mxu0 0
  %46 = vmatprep.subr.bf16.mxu0 0
  %47 = vmatpush1.bf16.msra.mxu0 0
  %48 = vmatprep.subr.bf16.mxu0 0
  %49 = vmatpush1.bf16.msra.mxu0 0
  %50 = vmatprep.subr.bf16.mxu0 0
  %51 = vmatpush1.bf16.msra.mxu0 0
  %52 = vmatprep.subr.bf16.mxu0 0
  %53 = vmatpush1.bf16.msra.mxu0 0
  %54 = vmatprep.subr.bf16.mxu0 0
  %55 = vmatpush1.bf16.msra.mxu0 0
  %56 = vmatprep.subr.bf16.mxu0 0
  %57 = vmatpush1.bf16.msra.mxu0 0
  %58 = vmatprep.subr.bf16.mxu0 0
  %59 = vmatpush1.bf16.msra.mxu0 0
  %60 = vmatprep.subr.bf16.mxu0 0
  %61 = vmatpush1.bf16.msra.mxu0 0
  %62 = vmatprep.subr.bf16.mxu0 0
  %63 = vmatpush1.bf16.msra.mxu0 0
  %64 = vmatprep.subr.bf16.mxu0 0
  %65 = vmatpush1.bf16.msra.mxu0 0
  %66 = vmatprep.mubr.bf16.mxu0 0
  %67 = vmatmul.mubr.bf16.gmra.mrb[0].mxu0 %v32
  %v68 = vpop.f32.mrb[0].mxu0
  %v69 = vadd.f32 %v22, %v68
  %v70 = vpop.f32.mrb[0].mxu0
  %v71 = vpop.f32.mrb[0].mxu0
  %v72 = vpop.f32.mrb[0].mxu0
  %73 = vdwg.mxu0
  %74 = vst [vmem:[%s3] sm:$0xff] %v69
  // Predicated region
  $region14: #{a_call__.1} parent=0 // pred_check
    _
  $region15: #{a_call__.1} parent=0 // pred_check_branch
    %76 = sbr.rel (0) target = $region17
  $region16: #{a_call__.1} parent=0 // pred_region
    _
  $region17: #{a_call__.1} parent=0 // pred_fallthru
    _
  // Predicated region
  $region18: #{a_call__.1} parent=0 // pred_check
    _
  $region19: #{a_call__.1} parent=0 // pred_check_branch
    %78 = sbr.rel (0) target = $region21
  $region20: #{a_call__.1} parent=0 // pred_region
    _
  $region21: #{a_call__.1} parent=0 // pred_fallthru
    _

</llo_original>
